<compile_context>
chip_gen: v6e
topology: v6e:2x2x1
jax: 0.10.0
libtpu: 0.0.40
codegen_flags: <defaults>
</compile_context>

<pallas_src>
import functools

import jax
import jax.numpy as jnp
from jax.experimental import pallas as pl
from jax.experimental.pallas import tpu as pltpu


def _mlp_kernel(num_hidden, *refs):
    """refs = (x_ref, w_0 .. w_{num_hidden-1}, smalls_ref, out_ref).

    x_ref      : (in_features, tile_b)   batch in the lane dimension
    w_l        : (out_l, in_l)           torch-layout hidden weight (f32 or bf16)
    smalls_ref : (H, num_hidden + 2) f32 packed small params:
                   column l < num_hidden  -> bias of hidden layer l
                   column num_hidden      -> final (1-wide) weight, as a column
                   column num_hidden + 1  -> final bias at row 0
    out_ref    : (1, tile_b)
    """
    x_ref = refs[0]
    out_ref = refs[-1]
    smalls_ref = refs[-2]
    w_refs = refs[1:1 + num_hidden]

    compute_dtype = w_refs[0].dtype                  # bf16 on v6e/v7x, f32 on v5e
    h = x_ref[...].astype(compute_dtype)             # (in, tile_b)

    # Hidden layers: Linear -> ReLU (-> Dropout, identity at inference).
    # TODO(synk): training-mode dropout is not implemented (inference semantics only).
    for l in range(num_hidden):
        w = w_refs[l][...]                                           # (H, in_l)
        acc = jnp.dot(w, h, preferred_element_type=jnp.float32)      # MXU, f32 acc
        b = smalls_ref[:, l:l + 1].astype(compute_dtype)             # (H, 1)
        h = jnp.maximum(acc.astype(compute_dtype) + b, 0.0)          # (H, tile_b) VPU

    # Final out_features == 1 layer: elementwise mul + sublane (XLU) reduce + EUP
    # sigmoid -> lane-dense (1, tile_b) output. Never reduces across lanes (batch),
    # so garbage in padded lanes of a partial last block stays isolated.
    w_f = smalls_ref[:, num_hidden:num_hidden + 1]                   # (H, 1) f32
    b_f = smalls_ref[0:1, num_hidden + 1:num_hidden + 2]             # (1, 1) f32
    logits = jnp.sum(h.astype(jnp.float32) * w_f, axis=0, keepdims=True) + b_f
    out_ref[...] = jax.nn.sigmoid(logits).astype(out_ref.dtype)


@functools.partial(jax.jit, static_argnames=("block_b", "param_buffers"))
def _mlp_forward_jit(x, weights, smalls, *, block_b, param_buffers):
    B, in_features = x.shape
    num_hidden = len(weights)
    H = smalls.shape[0]

    # Batch-in-lanes: one wrapper transpose (layout plumbing), no pad copy of x.
    x_t = x.T                                                        # (in_features, B)

    # Large, lane-aligned batch tile.
    if B <= 128:
        tile_b = B                      # one full-extent block (divisibility rule OK)
    else:
        tile_b = min(block_b, pl.cdiv(B, 128) * 128)
        tile_b = max(128, (tile_b // 128) * 128)
        if pl.cdiv(B, tile_b) < 2 and tile_b > 128:
            # v7x megacore: keep >= 2 grid steps so both TensorCores get work.
            tile_b = max(128, pl.cdiv(pl.cdiv(B, 2), 128) * 128)
    grid = (pl.cdiv(B, tile_b),)

    # Grid-invariant params: constant block index -> DMA'd once, VMEM-resident.
    if param_buffers is not None:
        def param_spec(shape):
            return pl.BlockSpec(shape, lambda i: (0, 0),
                                pipeline_mode=pl.Buffered(param_buffers))
    else:
        def param_spec(shape):
            return pl.BlockSpec(shape, lambda i: (0, 0))

    in_specs = [pl.BlockSpec((in_features, tile_b), lambda i: (0, i))]
    for w in weights:
        in_specs.append(param_spec(w.shape))
    in_specs.append(param_spec(smalls.shape))

    # VMEM budget: params (1 or 2 buffers) + double-buffered x/out tiles + live acts.
    n_param_bufs = 1 if param_buffers == 1 else 2
    param_bytes = sum(int(w.size) * w.dtype.itemsize for w in weights)
    param_bytes += int(smalls.size) * smalls.dtype.itemsize
    x_tile_bytes = max(8, in_features) * tile_b * x.dtype.itemsize
    out_tile_bytes = 8 * tile_b * 4
    act_bytes = 4 * H * tile_b * 4
    est = n_param_bufs * param_bytes + 2 * (x_tile_bytes + out_tile_bytes) + act_bytes
    vmem_limit = int(min(64 << 20, max(32 << 20, 2 * est)))

    out = pl.pallas_call(
        functools.partial(_mlp_kernel, num_hidden),
        out_shape=jax.ShapeDtypeStruct((1, B), jnp.float32),
        grid=grid,
        in_specs=in_specs,
        out_specs=pl.BlockSpec((1, tile_b), lambda i: (0, i)),
        compiler_params=pltpu.CompilerParams(
            dimension_semantics=("parallel",),
            vmem_limit_bytes=vmem_limit),
    )(x_t, *weights, smalls)

    # MLP_Net returns sigmoid(head).mean(dim=1); the head is 1-wide so mean == squeeze.
    return out[0]


_PARAM_BUFFERS = 1   # pl.Buffered(1): single-buffer grid-invariant params


def mlp_forward(x, weights, smalls, *, block_b=2048):
    """Pallas forward pass of MLP_Net. Returns shape (B,) == sigmoid(head).mean(dim=1)."""
    global _PARAM_BUFFERS
    weights = tuple(weights)
    try:
        return _mlp_forward_jit(x, weights, smalls,
                                block_b=block_b, param_buffers=_PARAM_BUFFERS)
    except Exception:
        if _PARAM_BUFFERS is None:
            raise
        # This jax/Mosaic build rejects pipeline_mode=pl.Buffered(1); use defaults.
        _PARAM_BUFFERS = None
        return _mlp_forward_jit(x, weights, smalls,
                                block_b=block_b, param_buffers=None)


def init_params(key, input_size, layer_size, num_hidden_layers,
                weight_dtype=jnp.float32):
    """PyTorch-Linear-style U(-1/sqrt(fan_in), 1/sqrt(fan_in)) init.

    Returns:
      weights: list of (out, in) torch-layout hidden weights, dtype=weight_dtype
      smalls : (hidden, num_hidden_layers + 2) f32 packed biases / final-layer params
    """
    hidden = int(layer_size * input_size)
    dims = [input_size] + [hidden] * num_hidden_layers + [1]
    weights, small_cols = [], []
    for i in range(len(dims) - 1):
        fan_in, fan_out = dims[i], dims[i + 1]
        key, kw, kb = jax.random.split(key, 3)
        bound = 1.0 / (fan_in ** 0.5)
        w = jax.random.uniform(kw, (fan_out, fan_in), jnp.float32, -bound, bound)
        b = jax.random.uniform(kb, (fan_out,), jnp.float32, -bound, bound)
        if i < len(dims) - 2:
            weights.append(w.astype(weight_dtype))
            small_cols.append(b.reshape(hidden, 1))
        else:
            small_cols.append(w.reshape(hidden, 1))                       # final weight
            small_cols.append(
                jnp.zeros((hidden, 1), jnp.float32).at[0, 0].set(b[0]))   # final bias
    smalls = jnp.concatenate(small_cols, axis=1)                          # (hidden, L+2)
    return weights, smalls


def mlp_reference(x, weights, smalls):
    """Pure-JAX reference of the same forward pass (eval-mode dropout)."""
    num_hidden = len(weights)
    compute_dtype = weights[0].dtype
    h = x.T.astype(compute_dtype)                                         # (in, B)
    for l in range(num_hidden):
        acc = jnp.dot(weights[l], h, preferred_element_type=jnp.float32)
        h = jnp.maximum(acc.astype(compute_dtype)
                        + smalls[:, l:l + 1].astype(compute_dtype), 0.0)
    w_f = smalls[:, num_hidden:num_hidden + 1]
    b_f = smalls[0, num_hidden + 1]
    return jax.nn.sigmoid(jnp.sum(h.astype(jnp.float32) * w_f, axis=0) + b_f)


if __name__ == "__main__":
    # Module hyperparameters (small shapes)
    input_size = 16
    layer_size = 2.0           # -> hidden size = int(2.0 * 16) = 32
    num_hidden_layers = 2
    dropout = 0.1              # identity at inference

    key = jax.random.PRNGKey(0)
    kx1, kx2, kp = jax.random.split(key, 3)

    # --- f32 weights, B=40 (single partial block, B not a lane multiple) ---
    weights, smalls = init_params(kp, input_size, layer_size, num_hidden_layers,
                                  weight_dtype=jnp.float32)
    x = jax.random.normal(kx1, (40, input_size), dtype=jnp.float32)
    out = jax.block_until_ready(mlp_forward(x, weights, smalls))
    ref = mlp_reference(x, weights, smalls)
    assert out.shape == (40,), out.shape
    assert jnp.allclose(out, ref, atol=1e-5, rtol=1e-5), (out, ref)

    # --- f32 weights, B=300 (multi-step grid + masked partial last block) ---
    x_big = jax.random.normal(kx2, (300, input_size), dtype=jnp.float32)
    out_big = jax.block_until_ready(mlp_forward(x_big, weights, smalls))
    ref_big = mlp_reference(x_big, weights, smalls)
    assert out_big.shape == (300,), out_big.shape
    assert jnp.allclose(out_big, ref_big, atol=1e-5, rtol=1e-5)

    # --- bf16 weight storage (v6e/v7x path): bf16 inter-layer activations ---
    weights_bf, smalls_bf = init_params(kp, input_size, layer_size, num_hidden_layers,
                                        weight_dtype=jnp.bfloat16)
    out_bf = jax.block_until_ready(mlp_forward(x, weights_bf, smalls_bf))
    ref_bf = mlp_reference(x, weights_bf, smalls_bf)
    assert out_bf.shape == (40,), out_bf.shape
    assert jnp.allclose(out_bf, ref_bf, atol=5e-3, rtol=5e-3), (out_bf, ref_bf)

    print("KERNEL_OK")
</pallas_src>

<mosaic_0001>
module attributes {stable_mosaic.version = 11 : i64} {
  func.func @_mlp_kernel(%arg0: i32, %arg1: memref<16x40xf32, #tpu.memory_space<vmem>>, %arg2: memref<32x16xf32, #tpu.memory_space<vmem>>, %arg3: memref<32x32xf32, #tpu.memory_space<vmem>>, %arg4: memref<32x4xf32, #tpu.memory_space<vmem>>, %arg5: memref<1x40xf32, #tpu.memory_space<vmem>>) attributes {dimension_semantics = [#tpu.dimension_semantics<parallel>], iteration_bounds = array<i64: 1>, scalar_prefetch = 0 : i64, scratch_operands = 0 : i64, tpu.core_type = #tpu.core_type<tc>, window_params = [{transform_indices = @transform_0, window_bounds = array<i64: 16, 40>}, {pipeline_mode = #tpu.pipeline_mode<synchronous>, transform_indices = @transform_1, window_bounds = array<i64: 32, 16>}, {pipeline_mode = #tpu.pipeline_mode<synchronous>, transform_indices = @transform_2, window_bounds = array<i64: 32, 32>}, {pipeline_mode = #tpu.pipeline_mode<synchronous>, transform_indices = @transform_3, window_bounds = array<i64: 32, 4>}, {transform_indices = @transform_4, window_bounds = array<i64: 1, 40>}]} {
    %c0 = arith.constant 0 : index
    %c0_0 = arith.constant 0 : index
    %0 = vector.load %arg1[%c0, %c0_0] : memref<16x40xf32, #tpu.memory_space<vmem>>, vector<16x40xf32>
    %c0_1 = arith.constant 0 : index
    %c0_2 = arith.constant 0 : index
    %1 = vector.load %arg2[%c0_1, %c0_2] : memref<32x16xf32, #tpu.memory_space<vmem>>, vector<32x16xf32>
    %cst = arith.constant dense<0.000000e+00> : vector<32x40xf32>
    %2 = tpu.matmul %1, %0, %cst {dimension_numbers = #tpu.dot_dimension_numbers<[1], [0], [0], [1], [0, 0, 1, 1], [], []>} : vector<32x16xf32>, vector<16x40xf32>, vector<32x40xf32> -> vector<32x40xf32>
    %c0_3 = arith.constant 0 : index
    %c0_4 = arith.constant 0 : index
    %3 = vector.load %arg4[%c0_3, %c0_4] : memref<32x4xf32, #tpu.memory_space<vmem>>, vector<32x1xf32>
    %4 = vector.broadcast %3 : vector<32x1xf32> to vector<32x40xf32>
    %5 = arith.addf %2, %4 : vector<32x40xf32>
    %cst_5 = arith.constant 0.000000e+00 : f32
    %6 = vector.broadcast %cst_5 : f32 to vector<32x40xf32>
    %7 = arith.maximumf %5, %6 : vector<32x40xf32>
    %c0_6 = arith.constant 0 : index
    %c0_7 = arith.constant 0 : index
    %8 = vector.load %arg3[%c0_6, %c0_7] : memref<32x32xf32, #tpu.memory_space<vmem>>, vector<32x32xf32>
    %cst_8 = arith.constant dense<0.000000e+00> : vector<32x40xf32>
    %9 = tpu.matmul %8, %7, %cst_8 {dimension_numbers = #tpu.dot_dimension_numbers<[1], [0], [0], [1], [0, 0, 1, 1], [], []>} : vector<32x32xf32>, vector<32x40xf32>, vector<32x40xf32> -> vector<32x40xf32>
    %c0_9 = arith.constant 0 : index
    %c1 = arith.constant 1 : index
    %10 = vector.load %arg4[%c0_9, %c1] : memref<32x4xf32, #tpu.memory_space<vmem>>, vector<32x1xf32>
    %11 = vector.broadcast %10 : vector<32x1xf32> to vector<32x40xf32>
    %12 = arith.addf %9, %11 : vector<32x40xf32>
    %cst_10 = arith.constant 0.000000e+00 : f32
    %13 = vector.broadcast %cst_10 : f32 to vector<32x40xf32>
    %14 = arith.maximumf %12, %13 : vector<32x40xf32>
    %c0_11 = arith.constant 0 : index
    %c2 = arith.constant 2 : index
    %15 = vector.load %arg4[%c0_11, %c2] : memref<32x4xf32, #tpu.memory_space<vmem>>, vector<32x1xf32>
    %c0_12 = arith.constant 0 : index
    %c3 = arith.constant 3 : index
    %16 = vector.load %arg4[%c0_12, %c3] : memref<32x4xf32, #tpu.memory_space<vmem>>, vector<1x1xf32>
    %17 = vector.broadcast %15 : vector<32x1xf32> to vector<32x40xf32>
    %18 = arith.mulf %14, %17 : vector<32x40xf32>
    %cst_13 = arith.constant dense<0.000000e+00> : vector<40xf32>
    %19 = vector.multi_reduction <add>, %18, %cst_13 [0] : vector<32x40xf32> to vector<40xf32>
    %20 = vector.shape_cast %19 : vector<40xf32> to vector<1x40xf32>
    %21 = vector.broadcast %16 : vector<1x1xf32> to vector<1x40xf32>
    %22 = arith.addf %20, %21 : vector<1x40xf32>
    %23 = arith.negf %22 : vector<1x40xf32>
    %24 = math.exp %23 : vector<1x40xf32>
    %cst_14 = arith.constant 1.000000e+00 : f32
    %25 = vector.broadcast %cst_14 : f32 to vector<1x40xf32>
    %26 = arith.addf %25, %24 : vector<1x40xf32>
    %27 = arith.divf %25, %26 : vector<1x40xf32>
    %c0_15 = arith.constant 0 : index
    %c0_16 = arith.constant 0 : index
    %28 = vector.load %arg5[%c0_15, %c0_16] : memref<1x40xf32, #tpu.memory_space<vmem>>, vector<1x40xf32>
    tpu.vector_store %arg5[%c0_15, %c0_16], %27 {strides = array<i32>} : memref<1x40xf32, #tpu.memory_space<vmem>>, vector<1x40xf32>,
    return
  }
  func.func @transform_0(%arg0: i32) -> (i32, i32) {
    %c0_i32 = arith.constant 0 : i32
    %c0_i32_0 = arith.constant 0 : i32
    return %c0_i32, %arg0 : i32, i32
  }
  func.func @transform_1(%arg0: i32) -> (i32, i32) {
    %c0_i32 = arith.constant 0 : i32
    %c0_i32_0 = arith.constant 0 : i32
    %c0_i32_1 = arith.constant 0 : i32
    return %c0_i32, %c0_i32_0 : i32, i32
  }
  func.func @transform_2(%arg0: i32) -> (i32, i32) {
    %c0_i32 = arith.constant 0 : i32
    %c0_i32_0 = arith.constant 0 : i32
    %c0_i32_1 = arith.constant 0 : i32
    return %c0_i32, %c0_i32_0 : i32, i32
  }
  func.func @transform_3(%arg0: i32) -> (i32, i32) {
    %c0_i32 = arith.constant 0 : i32
    %c0_i32_0 = arith.constant 0 : i32
    %c0_i32_1 = arith.constant 0 : i32
    return %c0_i32, %c0_i32_0 : i32, i32
  }
  func.func @transform_4(%arg0: i32) -> (i32, i32) {
    %c0_i32 = arith.constant 0 : i32
    %c0_i32_0 = arith.constant 0 : i32
    return %c0_i32, %arg0 : i32, i32
  }
}

module attributes {stable_mosaic.version = 11 : i64} {
  func.func @_mlp_kernel(%arg0: i32, %arg1: memref<16x40xf32, #tpu.memory_space<vmem>>, %arg2: memref<32x16xf32, #tpu.memory_space<vmem>>, %arg3: memref<32x32xf32, #tpu.memory_space<vmem>>, %arg4: memref<32x4xf32, #tpu.memory_space<vmem>>, %arg5: memref<1x40xf32, #tpu.memory_space<vmem>>) attributes {dimension_semantics = [#tpu.dimension_semantics<parallel>], iteration_bounds = array<i64: 1>, scalar_prefetch = 0 : i64, scratch_operands = 0 : i64, tpu.core_type = #tpu.core_type<tc>, window_params = [{transform_indices = @transform_0, window_bounds = array<i64: 16, 40>}, {pipeline_mode = #tpu.pipeline_mode<synchronous>, transform_indices = @transform_1, window_bounds = array<i64: 32, 16>}, {pipeline_mode = #tpu.pipeline_mode<synchronous>, transform_indices = @transform_2, window_bounds = array<i64: 32, 32>}, {pipeline_mode = #tpu.pipeline_mode<synchronous>, transform_indices = @transform_3, window_bounds = array<i64: 32, 4>}, {transform_indices = @transform_4, window_bounds = array<i64: 1, 40>}]} {
    %c0 = arith.constant 0 : index
    %c0_0 = arith.constant 0 : index
    %0 = vector.load %arg1[%c0, %c0_0] : memref<16x40xf32, #tpu.memory_space<vmem>>, vector<16x40xf32>
    %c0_1 = arith.constant 0 : index
    %c0_2 = arith.constant 0 : index
    %1 = vector.load %arg2[%c0_1, %c0_2] : memref<32x16xf32, #tpu.memory_space<vmem>>, vector<32x16xf32>
    %cst = arith.constant dense<0.000000e+00> : vector<32x40xf32>
    %2 = tpu.matmul %1, %0, %cst {dimension_numbers = #tpu.dot_dimension_numbers<[1], [0], [0], [1], [0, 0, 1, 1], [], []>} : vector<32x16xf32>, vector<16x40xf32>, vector<32x40xf32> -> vector<32x40xf32>
    %c0_3 = arith.constant 0 : index
    %c0_4 = arith.constant 0 : index
    %3 = vector.load %arg4[%c0_3, %c0_4] : memref<32x4xf32, #tpu.memory_space<vmem>>, vector<32x1xf32>
    %4 = vector.broadcast %3 : vector<32x1xf32> to vector<32x40xf32>
    %5 = arith.addf %2, %4 : vector<32x40xf32>
    %cst_5 = arith.constant 0.000000e+00 : f32
    %6 = vector.broadcast %cst_5 : f32 to vector<32x40xf32>
    %7 = arith.maximumf %5, %6 : vector<32x40xf32>
    %c0_6 = arith.constant 0 : index
    %c0_7 = arith.constant 0 : index
    %8 = vector.load %arg3[%c0_6, %c0_7] : memref<32x32xf32, #tpu.memory_space<vmem>>, vector<32x32xf32>
    %cst_8 = arith.constant dense<0.000000e+00> : vector<32x40xf32>
    %9 = tpu.matmul %8, %7, %cst_8 {dimension_numbers = #tpu.dot_dimension_numbers<[1], [0], [0], [1], [0, 0, 1, 1], [], []>} : vector<32x32xf32>, vector<32x40xf32>, vector<32x40xf32> -> vector<32x40xf32>
    %c0_9 = arith.constant 0 : index
    %c1 = arith.constant 1 : index
    %10 = vector.load %arg4[%c0_9, %c1] : memref<32x4xf32, #tpu.memory_space<vmem>>, vector<32x1xf32>
    %11 = vector.broadcast %10 : vector<32x1xf32> to vector<32x40xf32>
    %12 = arith.addf %9, %11 : vector<32x40xf32>
    %cst_10 = arith.constant 0.000000e+00 : f32
    %13 = vector.broadcast %cst_10 : f32 to vector<32x40xf32>
    %14 = arith.maximumf %12, %13 : vector<32x40xf32>
    %c0_11 = arith.constant 0 : index
    %c2 = arith.constant 2 : index
    %15 = vector.load %arg4[%c0_11, %c2] : memref<32x4xf32, #tpu.memory_space<vmem>>, vector<32x1xf32>
    %c0_12 = arith.constant 0 : index
    %c3 = arith.constant 3 : index
    %16 = vector.load %arg4[%c0_12, %c3] : memref<32x4xf32, #tpu.memory_space<vmem>>, vector<1x1xf32>
    %17 = vector.broadcast %15 : vector<32x1xf32> to vector<32x40xf32>
    %18 = arith.mulf %14, %17 : vector<32x40xf32>
    %cst_13 = arith.constant dense<0.000000e+00> : vector<40xf32>
    %19 = vector.multi_reduction <add>, %18, %cst_13 [0] : vector<32x40xf32> to vector<40xf32>
    %20 = vector.shape_cast %19 : vector<40xf32> to vector<1x40xf32>
    %21 = vector.broadcast %16 : vector<1x1xf32> to vector<1x40xf32>
    %22 = arith.addf %20, %21 : vector<1x40xf32>
    %23 = arith.negf %22 : vector<1x40xf32>
    %24 = math.exp %23 : vector<1x40xf32>
    %cst_14 = arith.constant 1.000000e+00 : f32
    %25 = vector.broadcast %cst_14 : f32 to vector<1x40xf32>
    %26 = arith.addf %25, %24 : vector<1x40xf32>
    %27 = arith.divf %25, %26 : vector<1x40xf32>
    %c0_15 = arith.constant 0 : index
    %c0_16 = arith.constant 0 : index
    %28 = vector.load %arg5[%c0_15, %c0_16] : memref<1x40xf32, #tpu.memory_space<vmem>>, vector<1x40xf32>
    tpu.vector_store %arg5[%c0_15, %c0_16], %27 {strides = array<i32>} : memref<1x40xf32, #tpu.memory_space<vmem>>, vector<1x40xf32>,
    return
  }
  func.func @transform_0(%arg0: i32) -> (i32, i32) {
    %c0_i32 = arith.constant 0 : i32
    %c0_i32_0 = arith.constant 0 : i32
    return %c0_i32, %arg0 : i32, i32
  }
  func.func @transform_1(%arg0: i32) -> (i32, i32) {
    %c0_i32 = arith.constant 0 : i32
    %c0_i32_0 = arith.constant 0 : i32
    %c0_i32_1 = arith.constant 0 : i32
    return %c0_i32, %c0_i32_0 : i32, i32
  }
  func.func @transform_2(%arg0: i32) -> (i32, i32) {
    %c0_i32 = arith.constant 0 : i32
    %c0_i32_0 = arith.constant 0 : i32
    %c0_i32_1 = arith.constant 0 : i32
    return %c0_i32, %c0_i32_0 : i32, i32
  }
  func.func @transform_3(%arg0: i32) -> (i32, i32) {
    %c0_i32 = arith.constant 0 : i32
    %c0_i32_0 = arith.constant 0 : i32
    %c0_i32_1 = arith.constant 0 : i32
    return %c0_i32, %c0_i32_0 : i32, i32
  }
  func.func @transform_4(%arg0: i32) -> (i32, i32) {
    %c0_i32 = arith.constant 0 : i32
    %c0_i32_0 = arith.constant 0 : i32
    return %c0_i32, %arg0 : i32, i32
  }
}

</mosaic_0001>

<llo_original>
// kernel: _mlp_forward_jit.1
$region0: #{_mlp_forward_jit.1}
  #allocation0 [shape = 'u32[]', space=smem, size = 0x4, offset = 0x4, fixed_abs, tag = 'smem constant byte address 0x4 - core index']
  #allocation1 [shape = 'u32[144,128]{1,0:T(1,128)}', space=vmem, size = 0x12000, scoped, tag = 'internal scratch']
  %s0 = inlined_call_operand.vmem [shape: f32[16,40], index: 0, kind: input, shape index: {}]
  %s1 = inlined_call_operand.vmem [shape: f32[32,16], index: 1, kind: input, shape index: {}]
  %s2 = inlined_call_operand.vmem [shape: f32[32,32], index: 2, kind: input, shape index: {}]
  %s3 = inlined_call_operand.vmem [shape: f32[32,4], index: 3, kind: input, shape index: {}]
  %s4 = inlined_call_operand.hbm [shape: f32[1,40], index: 4, kind: output, shape index: {}]
  %s5 = sld [smem:[#allocation0]]
  $region26: #{_mlp_forward_jit.1} parent=0
    _
  %s7 = ssub.s32 1, %s5
  %s8 = scalar_select 0, %s7, %s5
  $region1: #{_mlp_forward_jit.1} parent=0
    #allocation2 [shape = 'u8[512]{0}', space=vmem, size = 0x400, scoped, tag = 'output window, operand 0, single buffered']
    #allocation3 [shape = 's32[1]{0}', space=sflag, size = 0x4, scoped, tag = 'scoped memory for _mlp_forward_jit.1']
    %9 = vsyncpa [#allocation3], 0
    // Predicated region
    $region2: #{_mlp_forward_jit.1} parent=1 // pred_check
      _
    $region3: #{_mlp_forward_jit.1} parent=1 // pred_check_branch
      %11 = sbr.rel (0) target = $region5
    $region4: #{_mlp_forward_jit.1} parent=1 // pred_region
      _
    $region5: #{_mlp_forward_jit.1} parent=1 // pred_fallthru
      _
    // Predicated region
    $region6: #{_mlp_forward_jit.1} parent=1 // pred_check
      _
    $region7: #{_mlp_forward_jit.1} parent=1 // pred_check_branch
      %13 = sbr.rel (0) target = $region9
    $region8: #{_mlp_forward_jit.1} parent=1 // pred_region
      _
    $region9: #{_mlp_forward_jit.1} parent=1 // pred_fallthru
      _
    // Predicated region
    $region10: #{_mlp_forward_jit.1} parent=1 // pred_check
      _
    $region11: #{_mlp_forward_jit.1} parent=1 // pred_check_branch
      %15 = sbr.rel (0) target = $region13
    $region12: #{_mlp_forward_jit.1} parent=1 // pred_region
      _
    $region13: #{_mlp_forward_jit.1} parent=1 // pred_fallthru
      _
    // Predicated region
    $region14: #{_mlp_forward_jit.1} parent=1 // pred_check
      _
    $region15: #{_mlp_forward_jit.1} parent=1 // pred_check_branch
      %17 = sbr.rel (0) target = $region17
    $region16: #{_mlp_forward_jit.1} parent=1 // pred_region
      _
    $region17: #{_mlp_forward_jit.1} parent=1 // pred_fallthru
      _
    %v18 = vld [vmem:[%s0] sm:$0xff]
    %v19 = vld [vmem:[%s0 + $0x8] sm:$0xff]
    %v20 = vld [vmem:[%s1] sm:$0xff]
    %v21 = vld [vmem:[%s1 + $0x8] sm:$0xff]
    %v22 = vld [vmem:[%s1 + $0x10] sm:$0xff]
    %v23 = vld [vmem:[%s1 + $0x18] sm:$0xff]
    %v24 = vld [vmem:[%s3] sm:$0xff]
    %v25 = vld [vmem:[%s3 + $0x8] sm:$0xff]
    %v26 = vld [vmem:[%s3 + $0x10] sm:$0xff]
    %v27 = vld [vmem:[%s3 + $0x18] sm:$0xff]
    %29 = vset.pattern.permute.xlu0 0
    %30 = vperm.xlu0 %29, %v24
    %v31 = vpop.permute.xlu0 %30
    %34 = vset.pattern.permute.xlu0 0
    %35 = vperm.xlu0 %34, %v25
    %v36 = vpop.permute.xlu0 %35
    %39 = vset.pattern.permute.xlu0 0
    %40 = vperm.xlu0 %39, %v26
    %v41 = vpop.permute.xlu0 %40
    %44 = vset.pattern.permute.xlu0 0
    %45 = vperm.xlu0 %44, %v27
    %v46 = vpop.permute.xlu0 %45
    %vm48 = vcmask 130048
    %v50 = vsel %vm48, %v20, 0
    %v53 = vsel %vm48, %v21, 0
    %v56 = vsel %vm48, %v22, 0
    %v59 = vsel %vm48, %v23, 0
    %61 = vmatprep.subr.mxu0 0.0
    %62 = vmatpush1.msra.mxu0 0.0
    %63 = vmatprep.subr.mxu0 0.0
    %64 = vmatpush1.msra.mxu0 0.0
    %65 = vmatprep.subr.mxu0 0.0
    %66 = vmatpush1.msra.mxu0 0.0
    %67 = vmatprep.subr.mxu0 0.0
    %68 = vmatpush1.msra.mxu0 0.0
    %69 = vmatprep.subr.mxu0 0.0
    %70 = vmatpush1.msra.mxu0 0.0
    %71 = vmatprep.subr.mxu0 0.0
    %72 = vmatpush1.msra.mxu0 0.0
    %73 = vmatprep.subr.mxu0 0.0
    %74 = vmatpush1.msra.mxu0 0.0
    %75 = vmatprep.subr.mxu0 0.0
    %76 = vmatpush1.msra.mxu0 0.0
    %77 = vmatprep.subr.mxu0 0.0
    %78 = vmatpush1.msra.mxu0 0.0
    %79 = vmatprep.subr.mxu0 0.0
    %80 = vmatpush1.msra.mxu0 0.0
    %81 = vmatprep.subr.mxu0 0.0
    %82 = vmatpush1.msra.mxu0 0.0
    %83 = vmatprep.subr.mxu0 0.0
    %84 = vmatpush1.msra.mxu0 0.0
    %85 = vmatprep.subr.mxu0 0.0
    %86 = vmatpush1.msra.mxu0 0.0
    %87 = vmatprep.subr.mxu0 0.0
    %88 = vmatpush1.msra.mxu0 0.0
    %89 = vmatprep.subr.mxu0 0.0
    %90 = vmatpush1.msra.mxu0 %v19
    %91 = vmatprep.subr.mxu0 0.0
    %92 = vmatpush1.msra.mxu0 %v18
    %93 = vmatprep.subr.mxu0 0.0
    %94 = vmatpush2.msra.mxu0 0.0
    %95 = vmatprep.subr.mxu0 0.0
    %96 = vmatpush2.msra.mxu0 0.0
    %97 = vmatprep.subr.mxu0 0.0
    %98 = vmatpush2.msra.mxu0 0.0
    %99 = vmatprep.subr.mxu0 0.0
    %100 = vmatpush2.msra.mxu0 0.0
    %101 = vmatprep.subr.mxu0 0.0
    %102 = vmatpush2.msra.mxu0 0.0
    %103 = vmatprep.subr.mxu0 0.0
    %104 = vmatpush2.msra.mxu0 0.0
    %105 = vmatprep.subr.mxu0 0.0
    %106 = vmatpush2.msra.mxu0 0.0
    %107 = vmatprep.subr.mxu0 0.0
    %108 = vmatpush2.msra.mxu0 0.0
    %109 = vmatprep.subr.mxu0 0.0
    %110 = vmatpush2.msra.mxu0 0.0
    %111 = vmatprep.subr.mxu0 0.0
    %112 = vmatpush2.msra.mxu0 0.0
    %113 = vmatprep.subr.mxu0 0.0
    %114 = vmatpush2.msra.mxu0 0.0
    %115 = vmatprep.subr.mxu0 0.0
    %116 = vmatpush2.msra.mxu0 0.0
    %117 = vmatprep.subr.mxu0 0.0
    %118 = vmatpush2.msra.mxu0 0.0
    %119 = vmatprep.subr.mxu0 0.0
    %120 = vmatpush2.msra.mxu0 0.0
    %121 = vmatprep.subr.mxu0 0.0
    %122 = vmatpush2.msra.mxu0 0.0
    %123 = vmatprep.subr.mxu0 0.0
    %124 = vmatpush2.msra.mxu0 0.0
    %125 = vmatprep.mubr.f32.mxu0 0.0
    %126 = vmatmul.mubr.f32.gmra.mxu0 %v50
    %v127 = vpop.f32.mrf.mxu0
    %v128 = vadd.f32 %v31, %v127
    %v129 = vpop.f32.mrf.mxu0
    %130 = vmatprep.mubr.f32.mxu0 0.0
    %131 = vmatmul.mubr.f32.gmra.mxu0 %v53
    %v132 = vpop.f32.mrf.mxu0
    %v133 = vadd.f32 %v36, %v132
    %v134 = vpop.f32.mrf.mxu0
    %135 = vmatprep.mubr.f32.mxu0 0.0
    %136 = vmatmul.mubr.f32.gmra.mxu0 %v56
    %v137 = vpop.f32.mrf.mxu0
    %v138 = vadd.f32 %v41, %v137
    %v139 = vpop.f32.mrf.mxu0
    %140 = vmatprep.mubr.f32.mxu0 0.0
    %141 = vmatmul.mubr.f32.gmra.mxu0 %v59
    %v142 = vpop.f32.mrf.mxu0
    %v143 = vadd.f32 %v46, %v142
    %v144 = vpop.f32.mrf.mxu0
    %145 = vdwg.mxu0
    %v146 = vmax.f32 %v128, 0.0
    %v147 = vmax.f32 %v133, 0.0
    %v148 = vmax.f32 %v138, 0.0
    %v149 = vmax.f32 %v143, 0.0
    %v150 = vld [vmem:[%s2] sm:$0xff]
    %v151 = vld [vmem:[%s2 + $0x8] sm:$0xff]
    %v152 = vld [vmem:[%s2 + $0x10] sm:$0xff]
    %v153 = vld [vmem:[%s2 + $0x18] sm:$0xff]
    %154 = vset.pattern.permute.xlu0 1
    %155 = vperm.xlu0 %154, %v24
    %v156 = vpop.permute.xlu0 %155
    %158 = vset.pattern.permute.xlu0 1
    %159 = vperm.xlu0 %158, %v25
    %v160 = vpop.permute.xlu0 %159
    %162 = vset.pattern.permute.xlu0 1
    %163 = vperm.xlu0 %162, %v26
    %v164 = vpop.permute.xlu0 %163
    %166 = vset.pattern.permute.xlu0 1
    %167 = vperm.xlu0 %166, %v27
    %v168 = vpop.permute.xlu0 %167
    %vm170 = vcmask 261120
    %v172 = vsel %vm170, %v150, 0
    %v175 = vsel %vm170, %v151, 0
    %v178 = vsel %vm170, %v152, 0
    %v181 = vsel %vm170, %v153, 0
    %183 = vmatprep.subr.mxu0 0.0
    %184 = vmatpush1.msra.mxu0 0.0
    %185 = vmatprep.subr.mxu0 0.0
    %186 = vmatpush1.msra.mxu0 0.0
    %187 = vmatprep.subr.mxu0 0.0
    %188 = vmatpush1.msra.mxu0 0.0
    %189 = vmatprep.subr.mxu0 0.0
    %190 = vmatpush1.msra.mxu0 0.0
    %191 = vmatprep.subr.mxu0 0.0
    %192 = vmatpush1.msra.mxu0 0.0
    %193 = vmatprep.subr.mxu0 0.0
    %194 = vmatpush1.msra.mxu0 0.0
    %195 = vmatprep.subr.mxu0 0.0
    %196 = vmatpush1.msra.mxu0 0.0
    %197 = vmatprep.subr.mxu0 0.0
    %198 = vmatpush1.msra.mxu0 0.0
    %199 = vmatprep.subr.mxu0 0.0
    %200 = vmatpush1.msra.mxu0 0.0
    %201 = vmatprep.subr.mxu0 0.0
    %202 = vmatpush1.msra.mxu0 0.0
    %203 = vmatprep.subr.mxu0 0.0
    %204 = vmatpush1.msra.mxu0 0.0
    %205 = vmatprep.subr.mxu0 0.0
    %206 = vmatpush1.msra.mxu0 0.0
    %207 = vmatprep.subr.mxu0 0.0
    %208 = vmatpush1.msra.mxu0 %v149
    %209 = vmatprep.subr.mxu0 0.0
    %210 = vmatpush1.msra.mxu0 %v148
    %211 = vmatprep.subr.mxu0 0.0
    %212 = vmatpush1.msra.mxu0 %v147
    %213 = vmatprep.subr.mxu0 0.0
    %214 = vmatpush1.msra.mxu0 %v146
    %215 = vmatprep.subr.mxu0 0.0
    %216 = vmatpush2.msra.mxu0 0.0
    %217 = vmatprep.subr.mxu0 0.0
    %218 = vmatpush2.msra.mxu0 0.0
    %219 = vmatprep.subr.mxu0 0.0
    %220 = vmatpush2.msra.mxu0 0.0
    %221 = vmatprep.subr.mxu0 0.0
    %222 = vmatpush2.msra.mxu0 0.0
    %223 = vmatprep.subr.mxu0 0.0
    %224 = vmatpush2.msra.mxu0 0.0
    %225 = vmatprep.subr.mxu0 0.0
    %226 = vmatpush2.msra.mxu0 0.0
    %227 = vmatprep.subr.mxu0 0.0
    %228 = vmatpush2.msra.mxu0 0.0
    %229 = vmatprep.subr.mxu0 0.0
    %230 = vmatpush2.msra.mxu0 0.0
    %231 = vmatprep.subr.mxu0 0.0
    %232 = vmatpush2.msra.mxu0 0.0
    %233 = vmatprep.subr.mxu0 0.0
    %234 = vmatpush2.msra.mxu0 0.0
    %235 = vmatprep.subr.mxu0 0.0
    %236 = vmatpush2.msra.mxu0 0.0
    %237 = vmatprep.subr.mxu0 0.0
    %238 = vmatpush2.msra.mxu0 0.0
    %239 = vmatprep.subr.mxu0 0.0
    %240 = vmatpush2.msra.mxu0 0.0
    %241 = vmatprep.subr.mxu0 0.0
    %242 = vmatpush2.msra.mxu0 0.0
    %243 = vmatprep.subr.mxu0 0.0
    %244 = vmatpush2.msra.mxu0 0.0
    %245 = vmatprep.subr.mxu0 0.0
    %246 = vmatpush2.msra.mxu0 0.0
    %247 = vmatprep.mubr.f32.mxu0 0.0
    %248 = vmatmul.mubr.f32.gmra.mxu0 %v172
    %v249 = vpop.f32.mrf.mxu0
    %v250 = vadd.f32 %v156, %v249
    %v251 = vpop.f32.mrf.mxu0
    %252 = vmatprep.mubr.f32.mxu0 0.0
    %253 = vmatmul.mubr.f32.gmra.mxu0 %v175
    %v254 = vpop.f32.mrf.mxu0
    %v255 = vadd.f32 %v160, %v254
    %v256 = vpop.f32.mrf.mxu0
    %257 = vmatprep.mubr.f32.mxu0 0.0
    %258 = vmatmul.mubr.f32.gmra.mxu0 %v178
    %v259 = vpop.f32.mrf.mxu0
    %v260 = vadd.f32 %v164, %v259
    %v261 = vpop.f32.mrf.mxu0
    %262 = vmatprep.mubr.f32.mxu0 0.0
    %263 = vmatmul.mubr.f32.gmra.mxu0 %v181
    %v264 = vpop.f32.mrf.mxu0
    %v265 = vadd.f32 %v168, %v264
    %v266 = vpop.f32.mrf.mxu0
    %267 = vdwg.mxu0
    %v268 = vmax.f32 %v250, 0.0
    %v269 = vmax.f32 %v255, 0.0
    %v270 = vmax.f32 %v260, 0.0
    %v271 = vmax.f32 %v265, 0.0
    %v272 = vld [vmem:[%s3] sm:$0x1]
    %273 = vset.pattern.permute.xlu0 2
    %274 = vperm.xlu0 %273, %v24
    %v275 = vpop.permute.xlu0 %274
    %277 = vset.pattern.permute.xlu0 2
    %278 = vperm.xlu0 %277, %v25
    %v279 = vpop.permute.xlu0 %278
    %281 = vset.pattern.permute.xlu0 2
    %282 = vperm.xlu0 %281, %v26
    %v283 = vpop.permute.xlu0 %282
    %285 = vset.pattern.permute.xlu0 2
    %286 = vperm.xlu0 %285, %v27
    %v287 = vpop.permute.xlu0 %286
    %v289 = vmul.f32 %v268, %v275
    %v290 = vmul.f32 %v269, %v279
    %v291 = vmul.f32 %v270, %v283
    %v292 = vmul.f32 %v271, %v287
    %vm293 = vcmask 326656
    %v294 = vsel %vm293, %v289, 0.0
    %v295 = vsel %vm293, %v290, 0.0
    %v296 = vadd.f32 %v294, %v295
    %v297 = vsel %vm293, %v291, 0.0
    %v298 = vadd.f32 %v296, %v297
    %v299 = vsel %vm293, %v292, 0.0
    %v300 = vadd.f32 %v298, %v299
    %v301 = vrot.slane %v300, 4
    %v302 = vadd.f32 %v300, %v301
    %v303 = vrot.slane %v302, 2
    %v304 = vadd.f32 %v302, %v303
    %v305 = vrot.slane %v304, 1
    %v306 = vadd.f32 %v304, %v305
    %308 = vset.pattern.permute.xlu0 3
    %309 = vperm.xlu0 %308, %v272
    %v310 = vpop.permute.xlu0 %309
    %v312 = vadd.f32 %v306, %v310
    %v313 = vxor.u32 %v312, 2147483648
    %v314 = vmul.f32 %v313, 1.442695
    %v315 = vpow.pop %v314
    %v316 = vadd.f32 %v315, 1.0
    %v317 = vrcp.pop %v316
    %v318 = vmul.f32 1.0, %v317
    %vm319 = vcmask 319488
    %320 = vst.msk [vmem:[#allocation2] sm:$0x1] %vm319, %v318
    // Predicated region
    $region18: #{_mlp_forward_jit.1} parent=1 // pred_check
      _
    $region19: #{_mlp_forward_jit.1} parent=1 // pred_check_branch
      %322 = sbr.rel (0) target = $region21
    $region20: #{_mlp_forward_jit.1} parent=1 // pred_region
      %s324 = ssub.s32 16, 16
      %325 = vsyncadd [#allocation3], %s324
      %s327 = sshll.u32 [#allocation2], 4
      %s328 = int_to_ptr.vmem [resolvable:$true] %s327
      %330 = dma.vmem_to_hbm [thread:$0]  %s328, 16, %s4, [#allocation3]
    $region21: #{_mlp_forward_jit.1} parent=1 // pred_fallthru
      _
    // Predicated region
    $region22: #{_mlp_forward_jit.1} parent=1 // pred_check
      _
    $region23: #{_mlp_forward_jit.1} parent=1 // pred_check_branch
      %332 = sbr.rel (0) target = $region25
    $region24: #{_mlp_forward_jit.1} parent=1 // pred_region
      %333 = dma.done [#allocation3], 16
    $region25: #{_mlp_forward_jit.1} parent=1 // pred_fallthru
      _
    %334 = vsyncpa [#allocation3], 1

// kernel: _mlp_forward_jit.1
$region0: #{_mlp_forward_jit.1}
  #allocation0 [shape = 'u32[]', space=smem, size = 0x4, offset = 0x4, fixed_abs, tag = 'smem constant byte address 0x4 - core index']
  #allocation1 [shape = 'u32[144,128]{1,0:T(1,128)}', space=vmem, size = 0x12000, scoped, tag = 'internal scratch']
  %s0 = inlined_call_operand.vmem [shape: f32[16,40], index: 0, kind: input, shape index: {}]
  %s1 = inlined_call_operand.vmem [shape: f32[32,16], index: 1, kind: input, shape index: {}]
  %s2 = inlined_call_operand.vmem [shape: f32[32,32], index: 2, kind: input, shape index: {}]
  %s3 = inlined_call_operand.vmem [shape: f32[32,4], index: 3, kind: input, shape index: {}]
  %s4 = inlined_call_operand.hbm [shape: f32[1,40], index: 4, kind: output, shape index: {}]
  %s5 = sld [smem:[#allocation0]]
  $region26: #{_mlp_forward_jit.1} parent=0
    _
  %s7 = ssub.s32 1, %s5
  %s8 = scalar_select 0, %s7, %s5
  $region1: #{_mlp_forward_jit.1} parent=0
    #allocation2 [shape = 'u8[512]{0}', space=vmem, size = 0x400, scoped, tag = 'output window, operand 0, single buffered']
    #allocation3 [shape = 's32[1]{0}', space=sflag, size = 0x4, scoped, tag = 'scoped memory for _mlp_forward_jit.1']
    %9 = vsyncpa [#allocation3], 0
    // Predicated region
    $region2: #{_mlp_forward_jit.1} parent=1 // pred_check
      _
    $region3: #{_mlp_forward_jit.1} parent=1 // pred_check_branch
      %11 = sbr.rel (0) target = $region5
    $region4: #{_mlp_forward_jit.1} parent=1 // pred_region
      _
    $region5: #{_mlp_forward_jit.1} parent=1 // pred_fallthru
      _
    // Predicated region
    $region6: #{_mlp_forward_jit.1} parent=1 // pred_check
      _
    $region7: #{_mlp_forward_jit.1} parent=1 // pred_check_branch
      %13 = sbr.rel (0) target = $region9
    $region8: #{_mlp_forward_jit.1} parent=1 // pred_region
      _
    $region9: #{_mlp_forward_jit.1} parent=1 // pred_fallthru
      _
    // Predicated region
    $region10: #{_mlp_forward_jit.1} parent=1 // pred_check
      _
    $region11: #{_mlp_forward_jit.1} parent=1 // pred_check_branch
      %15 = sbr.rel (0) target = $region13
    $region12: #{_mlp_forward_jit.1} parent=1 // pred_region
      _
    $region13: #{_mlp_forward_jit.1} parent=1 // pred_fallthru
      _
    // Predicated region
    $region14: #{_mlp_forward_jit.1} parent=1 // pred_check
      _
    $region15: #{_mlp_forward_jit.1} parent=1 // pred_check_branch
      %17 = sbr.rel (0) target = $region17
    $region16: #{_mlp_forward_jit.1} parent=1 // pred_region
      _
    $region17: #{_mlp_forward_jit.1} parent=1 // pred_fallthru
      _
    %v18 = vld [vmem:[%s0] sm:$0xff]
    %v19 = vld [vmem:[%s0 + $0x8] sm:$0xff]
    %v20 = vld [vmem:[%s1] sm:$0xff]
    %v21 = vld [vmem:[%s1 + $0x8] sm:$0xff]
    %v22 = vld [vmem:[%s1 + $0x10] sm:$0xff]
    %v23 = vld [vmem:[%s1 + $0x18] sm:$0xff]
    %v24 = vld [vmem:[%s3] sm:$0xff]
    %v25 = vld [vmem:[%s3 + $0x8] sm:$0xff]
    %v26 = vld [vmem:[%s3 + $0x10] sm:$0xff]
    %v27 = vld [vmem:[%s3 + $0x18] sm:$0xff]
    %29 = vset.pattern.permute.xlu0 0
    %30 = vperm.xlu0 %29, %v24
    %v31 = vpop.permute.xlu0 %30
    %34 = vset.pattern.permute.xlu0 0
    %35 = vperm.xlu0 %34, %v25
    %v36 = vpop.permute.xlu0 %35
    %39 = vset.pattern.permute.xlu0 0
    %40 = vperm.xlu0 %39, %v26
    %v41 = vpop.permute.xlu0 %40
    %44 = vset.pattern.permute.xlu0 0
    %45 = vperm.xlu0 %44, %v27
    %v46 = vpop.permute.xlu0 %45
    %vm48 = vcmask 130048
    %v50 = vsel %vm48, %v20, 0
    %v53 = vsel %vm48, %v21, 0
    %v56 = vsel %vm48, %v22, 0
    %v59 = vsel %vm48, %v23, 0
    %61 = vmatprep.subr.mxu0 0.0
    %62 = vmatpush1.msra.mxu0 0.0
    %63 = vmatprep.subr.mxu0 0.0
    %64 = vmatpush1.msra.mxu0 0.0
    %65 = vmatprep.subr.mxu0 0.0
    %66 = vmatpush1.msra.mxu0 0.0
    %67 = vmatprep.subr.mxu0 0.0
    %68 = vmatpush1.msra.mxu0 0.0
    %69 = vmatprep.subr.mxu0 0.0
    %70 = vmatpush1.msra.mxu0 0.0
    %71 = vmatprep.subr.mxu0 0.0
    %72 = vmatpush1.msra.mxu0 0.0
    %73 = vmatprep.subr.mxu0 0.0
    %74 = vmatpush1.msra.mxu0 0.0
    %75 = vmatprep.subr.mxu0 0.0
    %76 = vmatpush1.msra.mxu0 0.0
    %77 = vmatprep.subr.mxu0 0.0
    %78 = vmatpush1.msra.mxu0 0.0
    %79 = vmatprep.subr.mxu0 0.0
    %80 = vmatpush1.msra.mxu0 0.0
    %81 = vmatprep.subr.mxu0 0.0
    %82 = vmatpush1.msra.mxu0 0.0
    %83 = vmatprep.subr.mxu0 0.0
    %84 = vmatpush1.msra.mxu0 0.0
    %85 = vmatprep.subr.mxu0 0.0
    %86 = vmatpush1.msra.mxu0 0.0
    %87 = vmatprep.subr.mxu0 0.0
    %88 = vmatpush1.msra.mxu0 0.0
    %89 = vmatprep.subr.mxu0 0.0
    %90 = vmatpush1.msra.mxu0 %v19
    %91 = vmatprep.subr.mxu0 0.0
    %92 = vmatpush1.msra.mxu0 %v18
    %93 = vmatprep.subr.mxu0 0.0
    %94 = vmatpush2.msra.mxu0 0.0
    %95 = vmatprep.subr.mxu0 0.0
    %96 = vmatpush2.msra.mxu0 0.0
    %97 = vmatprep.subr.mxu0 0.0
    %98 = vmatpush2.msra.mxu0 0.0
    %99 = vmatprep.subr.mxu0 0.0
    %100 = vmatpush2.msra.mxu0 0.0
    %101 = vmatprep.subr.mxu0 0.0
    %102 = vmatpush2.msra.mxu0 0.0
    %103 = vmatprep.subr.mxu0 0.0
    %104 = vmatpush2.msra.mxu0 0.0
    %105 = vmatprep.subr.mxu0 0.0
    %106 = vmatpush2.msra.mxu0 0.0
    %107 = vmatprep.subr.mxu0 0.0
    %108 = vmatpush2.msra.mxu0 0.0
    %109 = vmatprep.subr.mxu0 0.0
    %110 = vmatpush2.msra.mxu0 0.0
    %111 = vmatprep.subr.mxu0 0.0
    %112 = vmatpush2.msra.mxu0 0.0
    %113 = vmatprep.subr.mxu0 0.0
    %114 = vmatpush2.msra.mxu0 0.0
    %115 = vmatprep.subr.mxu0 0.0
    %116 = vmatpush2.msra.mxu0 0.0
    %117 = vmatprep.subr.mxu0 0.0
    %118 = vmatpush2.msra.mxu0 0.0
    %119 = vmatprep.subr.mxu0 0.0
    %120 = vmatpush2.msra.mxu0 0.0
    %121 = vmatprep.subr.mxu0 0.0
    %122 = vmatpush2.msra.mxu0 0.0
    %123 = vmatprep.subr.mxu0 0.0
    %124 = vmatpush2.msra.mxu0 0.0
    %125 = vmatprep.mubr.f32.mxu0 0.0
    %126 = vmatmul.mubr.f32.gmra.mxu0 %v50
    %v127 = vpop.f32.mrf.mxu0
    %v128 = vadd.f32 %v31, %v127
    %v129 = vpop.f32.mrf.mxu0
    %130 = vmatprep.mubr.f32.mxu0 0.0
    %131 = vmatmul.mubr.f32.gmra.mxu0 %v53
    %v132 = vpop.f32.mrf.mxu0
    %v133 = vadd.f32 %v36, %v132
    %v134 = vpop.f32.mrf.mxu0
    %135 = vmatprep.mubr.f32.mxu0 0.0
    %136 = vmatmul.mubr.f32.gmra.mxu0 %v56
    %v137 = vpop.f32.mrf.mxu0
    %v138 = vadd.f32 %v41, %v137
    %v139 = vpop.f32.mrf.mxu0
    %140 = vmatprep.mubr.f32.mxu0 0.0
    %141 = vmatmul.mubr.f32.gmra.mxu0 %v59
    %v142 = vpop.f32.mrf.mxu0
    %v143 = vadd.f32 %v46, %v142
    %v144 = vpop.f32.mrf.mxu0
    %145 = vdwg.mxu0
    %v146 = vmax.f32 %v128, 0.0
    %v147 = vmax.f32 %v133, 0.0
    %v148 = vmax.f32 %v138, 0.0
    %v149 = vmax.f32 %v143, 0.0
    %v150 = vld [vmem:[%s2] sm:$0xff]
    %v151 = vld [vmem:[%s2 + $0x8] sm:$0xff]
    %v152 = vld [vmem:[%s2 + $0x10] sm:$0xff]
    %v153 = vld [vmem:[%s2 + $0x18] sm:$0xff]
    %154 = vset.pattern.permute.xlu0 1
    %155 = vperm.xlu0 %154, %v24
    %v156 = vpop.permute.xlu0 %155
    %158 = vset.pattern.permute.xlu0 1
    %159 = vperm.xlu0 %158, %v25
    %v160 = vpop.permute.xlu0 %159
    %162 = vset.pattern.permute.xlu0 1
    %163 = vperm.xlu0 %162, %v26
    %v164 = vpop.permute.xlu0 %163
    %166 = vset.pattern.permute.xlu0 1
    %167 = vperm.xlu0 %166, %v27
    %v168 = vpop.permute.xlu0 %167
    %vm170 = vcmask 261120
    %v172 = vsel %vm170, %v150, 0
    %v175 = vsel %vm170, %v151, 0
    %v178 = vsel %vm170, %v152, 0
    %v181 = vsel %vm170, %v153, 0
    %183 = vmatprep.subr.mxu0 0.0
    %184 = vmatpush1.msra.mxu0 0.0
    %185 = vmatprep.subr.mxu0 0.0
    %186 = vmatpush1.msra.mxu0 0.0
    %187 = vmatprep.subr.mxu0 0.0
    %188 = vmatpush1.msra.mxu0 0.0
    %189 = vmatprep.subr.mxu0 0.0
    %190 = vmatpush1.msra.mxu0 0.0
    %191 = vmatprep.subr.mxu0 0.0
    %192 = vmatpush1.msra.mxu0 0.0
    %193 = vmatprep.subr.mxu0 0.0
    %194 = vmatpush1.msra.mxu0 0.0
    %195 = vmatprep.subr.mxu0 0.0
    %196 = vmatpush1.msra.mxu0 0.0
    %197 = vmatprep.subr.mxu0 0.0
    %198 = vmatpush1.msra.mxu0 0.0
    %199 = vmatprep.subr.mxu0 0.0
    %200 = vmatpush1.msra.mxu0 0.0
    %201 = vmatprep.subr.mxu0 0.0
    %202 = vmatpush1.msra.mxu0 0.0
    %203 = vmatprep.subr.mxu0 0.0
    %204 = vmatpush1.msra.mxu0 0.0
    %205 = vmatprep.subr.mxu0 0.0
    %206 = vmatpush1.msra.mxu0 0.0
    %207 = vmatprep.subr.mxu0 0.0
    %208 = vmatpush1.msra.mxu0 %v149
    %209 = vmatprep.subr.mxu0 0.0
    %210 = vmatpush1.msra.mxu0 %v148
    %211 = vmatprep.subr.mxu0 0.0
    %212 = vmatpush1.msra.mxu0 %v147
    %213 = vmatprep.subr.mxu0 0.0
    %214 = vmatpush1.msra.mxu0 %v146
    %215 = vmatprep.subr.mxu0 0.0
    %216 = vmatpush2.msra.mxu0 0.0
    %217 = vmatprep.subr.mxu0 0.0
    %218 = vmatpush2.msra.mxu0 0.0
    %219 = vmatprep.subr.mxu0 0.0
    %220 = vmatpush2.msra.mxu0 0.0
    %221 = vmatprep.subr.mxu0 0.0
    %222 = vmatpush2.msra.mxu0 0.0
    %223 = vmatprep.subr.mxu0 0.0
    %224 = vmatpush2.msra.mxu0 0.0
    %225 = vmatprep.subr.mxu0 0.0
    %226 = vmatpush2.msra.mxu0 0.0
    %227 = vmatprep.subr.mxu0 0.0
    %228 = vmatpush2.msra.mxu0 0.0
    %229 = vmatprep.subr.mxu0 0.0
    %230 = vmatpush2.msra.mxu0 0.0
    %231 = vmatprep.subr.mxu0 0.0
    %232 = vmatpush2.msra.mxu0 0.0
    %233 = vmatprep.subr.mxu0 0.0
    %234 = vmatpush2.msra.mxu0 0.0
    %235 = vmatprep.subr.mxu0 0.0
    %236 = vmatpush2.msra.mxu0 0.0
    %237 = vmatprep.subr.mxu0 0.0
    %238 = vmatpush2.msra.mxu0 0.0
    %239 = vmatprep.subr.mxu0 0.0
    %240 = vmatpush2.msra.mxu0 0.0
    %241 = vmatprep.subr.mxu0 0.0
    %242 = vmatpush2.msra.mxu0 0.0
    %243 = vmatprep.subr.mxu0 0.0
    %244 = vmatpush2.msra.mxu0 0.0
    %245 = vmatprep.subr.mxu0 0.0
    %246 = vmatpush2.msra.mxu0 0.0
    %247 = vmatprep.mubr.f32.mxu0 0.0
    %248 = vmatmul.mubr.f32.gmra.mxu0 %v172
    %v249 = vpop.f32.mrf.mxu0
    %v250 = vadd.f32 %v156, %v249
    %v251 = vpop.f32.mrf.mxu0
    %252 = vmatprep.mubr.f32.mxu0 0.0
    %253 = vmatmul.mubr.f32.gmra.mxu0 %v175
    %v254 = vpop.f32.mrf.mxu0
    %v255 = vadd.f32 %v160, %v254
    %v256 = vpop.f32.mrf.mxu0
    %257 = vmatprep.mubr.f32.mxu0 0.0
    %258 = vmatmul.mubr.f32.gmra.mxu0 %v178
    %v259 = vpop.f32.mrf.mxu0
    %v260 = vadd.f32 %v164, %v259
    %v261 = vpop.f32.mrf.mxu0
    %262 = vmatprep.mubr.f32.mxu0 0.0
    %263 = vmatmul.mubr.f32.gmra.mxu0 %v181
    %v264 = vpop.f32.mrf.mxu0
    %v265 = vadd.f32 %v168, %v264
    %v266 = vpop.f32.mrf.mxu0
    %267 = vdwg.mxu0
    %v268 = vmax.f32 %v250, 0.0
    %v269 = vmax.f32 %v255, 0.0
    %v270 = vmax.f32 %v260, 0.0
    %v271 = vmax.f32 %v265, 0.0
    %v272 = vld [vmem:[%s3] sm:$0x1]
    %273 = vset.pattern.permute.xlu0 2
    %274 = vperm.xlu0 %273, %v24
    %v275 = vpop.permute.xlu0 %274
    %277 = vset.pattern.permute.xlu0 2
    %278 = vperm.xlu0 %277, %v25
    %v279 = vpop.permute.xlu0 %278
    %281 = vset.pattern.permute.xlu0 2
    %282 = vperm.xlu0 %281, %v26
    %v283 = vpop.permute.xlu0 %282
    %285 = vset.pattern.permute.xlu0 2
    %286 = vperm.xlu0 %285, %v27
    %v287 = vpop.permute.xlu0 %286
    %v289 = vmul.f32 %v268, %v275
    %v290 = vmul.f32 %v269, %v279
    %v291 = vmul.f32 %v270, %v283
    %v292 = vmul.f32 %v271, %v287
    %vm293 = vcmask 326656
    %v294 = vsel %vm293, %v289, 0.0
    %v295 = vsel %vm293, %v290, 0.0
    %v296 = vadd.f32 %v294, %v295
    %v297 = vsel %vm293, %v291, 0.0
    %v298 = vadd.f32 %v296, %v297
    %v299 = vsel %vm293, %v292, 0.0
    %v300 = vadd.f32 %v298, %v299
    %v301 = vrot.slane %v300, 4
    %v302 = vadd.f32 %v300, %v301
    %v303 = vrot.slane %v302, 2
    %v304 = vadd.f32 %v302, %v303
    %v305 = vrot.slane %v304, 1
    %v306 = vadd.f32 %v304, %v305
    %308 = vset.pattern.permute.xlu0 3
    %309 = vperm.xlu0 %308, %v272
    %v310 = vpop.permute.xlu0 %309
    %v312 = vadd.f32 %v306, %v310
    %v313 = vxor.u32 %v312, 2147483648
    %v314 = vmul.f32 %v313, 1.442695
    %v315 = vpow.pop %v314
    %v316 = vadd.f32 %v315, 1.0
    %v317 = vrcp.pop %v316
    %v318 = vmul.f32 1.0, %v317
    %vm319 = vcmask 319488
    %320 = vst.msk [vmem:[#allocation2] sm:$0x1] %vm319, %v318
    // Predicated region
    $region18: #{_mlp_forward_jit.1} parent=1 // pred_check
      _
    $region19: #{_mlp_forward_jit.1} parent=1 // pred_check_branch
      %322 = sbr.rel (0) target = $region21
    $region20: #{_mlp_forward_jit.1} parent=1 // pred_region
      %s324 = ssub.s32 16, 16
      %325 = vsyncadd [#allocation3], %s324
      %s327 = sshll.u32 [#allocation2], 4
      %s328 = int_to_ptr.vmem [resolvable:$true] %s327
      %330 = dma.vmem_to_hbm [thread:$0]  %s328, 16, %s4, [#allocation3]
    $region21: #{_mlp_forward_jit.1} parent=1 // pred_fallthru
      _
    // Predicated region
    $region22: #{_mlp_forward_jit.1} parent=1 // pred_check
      _
    $region23: #{_mlp_forward_jit.1} parent=1 // pred_check_branch
      %332 = sbr.rel (0) target = $region25
    $region24: #{_mlp_forward_jit.1} parent=1 // pred_region
      %333 = dma.done [#allocation3], 16
    $region25: #{_mlp_forward_jit.1} parent=1 // pred_fallthru
      _
    %334 = vsyncpa [#allocation3], 1

</llo_original>
